<compile_context>
chip_gen: v5e
topology: v5e:2x2
jax: 0.10.0
libtpu: 0.0.40
codegen_flags: <defaults>
</compile_context>

<pallas_src>
import functools

import jax
import jax.numpy as jnp
from jax.experimental import pallas as pl
from jax.experimental.pallas import tpu as pltpu

_LANES = 128


def _round_up(a, b):
    return ((a + b - 1) // b) * b


def _chip_params():
    """Returns (target_block_bytes, vmem_limit_bytes_or_None, num_tcs, native_lowprec)."""
    try:
        kind = jax.devices()[0].device_kind.lower()
    except Exception:
        kind = ""
    if "v7" in kind:
        # ~3.2 TB/s HBM per TC; 64 MiB physical VMEM, 32 MiB default scoped.
        # 8 MiB blocks -> 2*(in+out) = 32 MiB double-buffered; raise the scoped
        # limit to 40 MiB for headroom while staying well under 64 MiB.
        return 8 << 20, 40 << 20, 2, True
    if "v6" in kind:
        # ~1.4 TB/s; 4 MiB blocks -> 16 MiB footprint under the 32 MiB default.
        return 4 << 20, None, 1, True
    if "v5" in kind:
        # ~820 GB/s; 3 MiB blocks -> 12 MiB, near v5e's 16 MiB default scoped
        # limit, so raise it explicitly.  No bf16 VPU/EUP -> compute in f32.
        return 3 << 20, 32 << 20, 1, False
    # Unknown chip / interpret mode: conservative defaults.
    return 2 << 20, 32 << 20, 1, False


def _silu_kernel(x_ref, o_ref, *, compute_dtype):
    x = x_ref[...].astype(compute_dtype)
    o_ref[...] = (x * jax.nn.sigmoid(x)).astype(o_ref.dtype)


def silu_pallas(x, *, tile_rows=None):
    if not jnp.issubdtype(x.dtype, jnp.floating):
        raise TypeError(f"SiLU is float-only; got dtype {x.dtype}")

    orig_shape = x.shape
    dtype = x.dtype
    n = x.size
    if n == 0:
        return x

    itemsize = jnp.dtype(dtype).itemsize
    # Packed-dtype min sublane tile: 8 rows for 4-byte, 16 rows for 2-byte.
    min_rows = max(8, 32 // itemsize)

    block_bytes, vmem_limit, num_tcs, native_lowprec = _chip_params()

    if tile_rows is None:
        tile_rows = max(min_rows, block_bytes // (_LANES * itemsize))
    tile_rows = _round_up(tile_rows, min_rows)

    rows = pl.cdiv(n, _LANES)
    rows_aligned = _round_up(rows, min_rows)
    aligned_n = rows_aligned * _LANES

    tm = min(tile_rows, rows_aligned)
    # v7x has 2 TensorCores: give the "parallel" grid axis >= 2 blocks when the
    # tensor allows so both cores take work.  Single-TC chips run the grid as a
    # serial loop, so never force a split there.
    if num_tcs == 2 and tm == rows_aligned and rows_aligned >= 2 * min_rows:
        tm = _round_up(pl.cdiv(rows_aligned, 2), min_rows)

    grid = (pl.cdiv(rows_aligned, tm),)  # partial last block is masked by Pallas

    if aligned_n == n:
        # Common case (e.g. NCHW activations): zero-copy reshape, no padding.
        x2d = jnp.reshape(x, (rows_aligned, _LANES))
    else:
        # Rare unaligned tail: pad only up to the (min_rows, 128) tile.
        # TODO(synk): split into an aligned-prefix kernel call plus a tiny tail
        # call to avoid the full-array pad/slice HBM round trip.
        x_flat = jnp.reshape(x, (-1,))
        x_flat = jnp.pad(x_flat, (0, aligned_n - n))
        x2d = jnp.reshape(x_flat, (rows_aligned, _LANES))

    # bf16/f16 VPU + EUP exist on v6e/v7x; keep the f32 upcast only where needed.
    if native_lowprec and dtype in (jnp.bfloat16, jnp.float16):
        compute_dtype = dtype
    else:
        compute_dtype = jnp.float32

    compiler_kwargs = dict(dimension_semantics=("parallel",))
    if vmem_limit is not None:
        compiler_kwargs["vmem_limit_bytes"] = vmem_limit

    out2d = pl.pallas_call(
        functools.partial(_silu_kernel, compute_dtype=compute_dtype),
        out_shape=jax.ShapeDtypeStruct((rows_aligned, _LANES), dtype),
        grid_spec=pltpu.PrefetchScalarGridSpec(
            num_scalar_prefetch=0,
            grid=grid,
            in_specs=[pl.BlockSpec((tm, _LANES), lambda i: (i, 0))],
            out_specs=pl.BlockSpec((tm, _LANES), lambda i: (i, 0)),
        ),
        compiler_params=pltpu.CompilerParams(**compiler_kwargs),
        cost_estimate=pl.CostEstimate(
            flops=4 * n,
            transcendentals=n,
            bytes_accessed=2 * n * itemsize,
        ),
    )(x2d)

    if aligned_n == n:
        return jnp.reshape(out2d, orig_shape)
    out_flat = jnp.reshape(out2d, (-1,))[:n]
    return jnp.reshape(out_flat, orig_shape)


if __name__ == "__main__":
    key = jax.random.PRNGKey(0)

    # NCHW-like input, consistent with the module's "(N, *)" contract.
    x = jax.random.normal(key, (2, 4, 16, 16), dtype=jnp.float32)
    out = jax.block_until_ready(silu_pallas(x))
    ref = x * jax.nn.sigmoid(x)
    assert out.shape == x.shape and out.dtype == x.dtype
    assert jnp.allclose(out, ref, atol=1e-5, rtol=1e-5)

    # Unaligned element count (exercises the padded path).
    x_odd = jax.random.normal(jax.random.PRNGKey(1), (3, 5, 7), dtype=jnp.float32)
    out_odd = jax.block_until_ready(silu_pallas(x_odd))
    ref_odd = x_odd * jax.nn.sigmoid(x_odd)
    assert out_odd.shape == x_odd.shape
    assert jnp.allclose(out_odd, ref_odd, atol=1e-5, rtol=1e-5)

    # bf16 path (native bf16 compute on v6e/v7x, f32 upcast elsewhere).
    x_bf = jax.random.normal(jax.random.PRNGKey(2), (2, 4, 16, 16), dtype=jnp.bfloat16)
    out_bf = jax.block_until_ready(silu_pallas(x_bf))
    ref_bf = (x_bf.astype(jnp.float32) * jax.nn.sigmoid(x_bf.astype(jnp.float32)))
    assert out_bf.shape == x_bf.shape and out_bf.dtype == jnp.bfloat16
    assert jnp.allclose(out_bf.astype(jnp.float32), ref_bf, atol=2e-2, rtol=2e-2)

    print("KERNEL_OK")
</pallas_src>

<mosaic_0001>
module attributes {stable_mosaic.version = 11 : i64} {
  func.func @_silu_kernel(%arg0: i32, %arg1: memref<16x128xf32, #tpu.memory_space<vmem>>, %arg2: memref<16x128xf32, #tpu.memory_space<vmem>>) attributes {dimension_semantics = [#tpu.dimension_semantics<parallel>], iteration_bounds = array<i64: 1>, scalar_prefetch = 0 : i64, scratch_operands = 0 : i64, tpu.core_type = #tpu.core_type<tc>, window_params = [{transform_indices = @transform_0, window_bounds = array<i64: 16, 128>}, {transform_indices = @transform_1, window_bounds = array<i64: 16, 128>}]} {
    %c0 = arith.constant 0 : index
    %c0_0 = arith.constant 0 : index
    %0 = vector.load %arg1[%c0, %c0_0] : memref<16x128xf32, #tpu.memory_space<vmem>>, vector<16x128xf32>
    %1 = arith.negf %0 : vector<16x128xf32>
    %2 = math.exp %1 : vector<16x128xf32>
    %cst = arith.constant 1.000000e+00 : f32
    %3 = vector.broadcast %cst : f32 to vector<16x128xf32>
    %4 = arith.addf %3, %2 : vector<16x128xf32>
    %5 = arith.divf %3, %4 : vector<16x128xf32>
    %6 = arith.mulf %0, %5 : vector<16x128xf32>
    %c0_1 = arith.constant 0 : index
    %c0_2 = arith.constant 0 : index
    %7 = vector.load %arg2[%c0_1, %c0_2] : memref<16x128xf32, #tpu.memory_space<vmem>>, vector<16x128xf32>
    tpu.vector_store %arg2[%c0_1, %c0_2], %6 {strides = array<i32>} : memref<16x128xf32, #tpu.memory_space<vmem>>, vector<16x128xf32>,
    return
  }
  func.func @transform_0(%arg0: i32) -> (i32, i32) {
    %c0_i32 = arith.constant 0 : i32
    %c0_i32_0 = arith.constant 0 : i32
    return %arg0, %c0_i32 : i32, i32
  }
  func.func @transform_1(%arg0: i32) -> (i32, i32) {
    %c0_i32 = arith.constant 0 : i32
    %c0_i32_0 = arith.constant 0 : i32
    return %arg0, %c0_i32 : i32, i32
  }
}

</mosaic_0001>

<llo_original>
// kernel: tpu_custom_call.1
$region0: #{tpu_custom_call.1}
  #allocation0 [shape = 'u32[]', space=smem, size = 0x4, offset = 0x4, fixed_abs, tag = 'smem constant byte address 0x4 - core index']
  #allocation1 [shape = 'u32[72,128]{1,0:T(1,128)}', space=vmem, size = 0x9000, scoped, tag = 'internal scratch']
  %s0 = inlined_call_operand.hbm [shape: f32[16,128], index: 0, kind: input, shape index: {}]
  %s1 = inlined_call_operand.hbm [shape: f32[16,128], index: 1, kind: output, shape index: {}]
  %s2 = sld [smem:[#allocation0]]
  $region18: #{tpu_custom_call.1} parent=0
    _
  %s4 = ssub.s32 1, %s2
  %s5 = scalar_select 0, %s4, %s2
  $region1: #{tpu_custom_call.1} parent=0
    #allocation2 [shape = 'u8[8192]{0}', space=vmem, size = 0x2000, scoped, tag = 'input window, operand 0, single buffered']
    #allocation3 [shape = 's32[1]{0}', space=sflag, size = 0x4, scoped, tag = 'scoped memory for tpu_custom_call.1']
    #allocation4 [shape = 's32[1]{0}', space=sflag, size = 0x4, scoped, tag = 'scoped memory for tpu_custom_call.1']
    #allocation5 [shape = 'u8[8192]{0}', space=vmem, size = 0x2000, scoped, tag = 'output window, operand 0, single buffered']
    %6 = vsyncpa [#allocation3], 0
    %7 = vsyncpa [#allocation4], 0
    // Predicated region
    $region2: #{tpu_custom_call.1} parent=1 // pred_check
      _
    $region3: #{tpu_custom_call.1} parent=1 // pred_check_branch
      %9 = sbr.rel (0) target = $region5
    $region4: #{tpu_custom_call.1} parent=1 // pred_region
      %11 = vsyncadd [#allocation3], 0
      %s12 = sshll.u32 %s0, 4
      %s13 = int_to_ptr.hbm [resolvable:$true] %s12
      %s14 = sshll.u32 [#allocation2], 4
      %s15 = int_to_ptr.vmem [resolvable:$true] %s14
      %20 = dma.hbm_to_vmem [thread:$0]  %s13, 256, %s15, [#allocation3], 128, 128, 8
    $region5: #{tpu_custom_call.1} parent=1 // pred_fallthru
      _
    // Predicated region
    $region6: #{tpu_custom_call.1} parent=1 // pred_check
      _
    $region7: #{tpu_custom_call.1} parent=1 // pred_check_branch
      %22 = sbr.rel (0) target = $region9
    $region8: #{tpu_custom_call.1} parent=1 // pred_region
      %24 = dma.done [#allocation3], 256
    $region9: #{tpu_custom_call.1} parent=1 // pred_fallthru
      _
    %v25 = vld [vmem:[#allocation2] sm:$0xff]
    %v26 = vld [vmem:[#allocation2 + $0x8] sm:$0xff]
    %v27 = vxor.u32 %v25, 2147483648
    %v28 = vxor.u32 %v26, 2147483648
    %v29 = vmul.f32 %v27, 1.442695
    %v30 = vpow.pop %v29
    %v31 = vmul.f32 %v28, 1.442695
    %v32 = vpow.pop %v31
    %v33 = vadd.f32 %v30, 1.0
    %v34 = vadd.f32 %v32, 1.0
    %v35 = vrcp.pop %v33
    %v36 = vmul.f32 %v33, %v35
    %v37 = vsub.f32 1.0, %v36
    %v38 = vmul.f32 %v35, %v37
    %v39 = vadd.f32 %v35, %v38
    %vm40 = vweird.f32 %v33
    %vm41 = vweird.f32 %v35
    %vm42 = vmor %vm40, %vm41
    %v43 = vsel %vm42, %v35, %v39
    %v44 = vand.u32 2147483647, %v33
    %vm45 = vcmp.eq.f32.partialorder %v44, 8.507059e+37
    %v46 = vand.u32 %v33, 2147483648
    %v47 = vor.u32 1.1754944e-38, %v46
    %v48 = vsel %vm45, %v47, %v43
    %v49 = vmul.f32 1.0, %v48
    %v50 = vrcp.pop %v34
    %v51 = vmul.f32 %v34, %v50
    %v52 = vsub.f32 1.0, %v51
    %v53 = vmul.f32 %v50, %v52
    %v54 = vadd.f32 %v50, %v53
    %vm55 = vweird.f32 %v34
    %vm56 = vweird.f32 %v50
    %vm57 = vmor %vm55, %vm56
    %v58 = vsel %vm57, %v50, %v54
    %v59 = vand.u32 2147483647, %v34
    %vm60 = vcmp.eq.f32.partialorder %v59, 8.507059e+37
    %v61 = vand.u32 %v34, 2147483648
    %v62 = vor.u32 1.1754944e-38, %v61
    %v63 = vsel %vm60, %v62, %v58
    %v64 = vmul.f32 1.0, %v63
    %v65 = vmul.f32 %v25, %v49
    %v66 = vmul.f32 %v26, %v64
    %67 = vst [vmem:[#allocation5] sm:$0xff] %v65
    %68 = vst [vmem:[#allocation5 + $0x8] sm:$0xff] %v66
    // Predicated region
    $region10: #{tpu_custom_call.1} parent=1 // pred_check
      _
    $region11: #{tpu_custom_call.1} parent=1 // pred_check_branch
      %70 = sbr.rel (0) target = $region13
    $region12: #{tpu_custom_call.1} parent=1 // pred_region
      %72 = vsyncadd [#allocation4], 0
      %s73 = sshll.u32 [#allocation5], 4
      %s74 = int_to_ptr.vmem [resolvable:$true] %s73
      %s75 = sshll.u32 %s1, 4
      %s76 = int_to_ptr.hbm [resolvable:$true] %s75
      %81 = dma.vmem_to_hbm [thread:$0]  %s74, 256, %s76, [#allocation4], 128, 128, 8
    $region13: #{tpu_custom_call.1} parent=1 // pred_fallthru
      _
    // Predicated region
    $region14: #{tpu_custom_call.1} parent=1 // pred_check
      _
    $region15: #{tpu_custom_call.1} parent=1 // pred_check_branch
      %83 = sbr.rel (0) target = $region17
    $region16: #{tpu_custom_call.1} parent=1 // pred_region
      %85 = dma.done [#allocation4], 256
    $region17: #{tpu_custom_call.1} parent=1 // pred_fallthru
      _
    %86 = vsyncpa [#allocation3], 1
    %87 = vsyncpa [#allocation4], 1

</llo_original>
